<compile_context>
chip_gen: v7x
topology: tpu7x:2x2x1
jax: 0.10.0
libtpu: 0.0.40
codegen_flags: <defaults>
</compile_context>

<pallas_src>
import jax
import jax.numpy as jnp
from jax.experimental import pallas as pl
from jax.experimental.pallas import tpu as pltpu

LANES = 128
SAMPLE_LANES = 16                        # flattened 4x4 grid per sample
SAMPLES_PER_ROW = LANES // SAMPLE_LANES  # 8 samples per 128-lane row


def _round_up(n, m):
    return ((n + m - 1) // m) * m


def _shift_left(x, k):
    """y[..., p] = x[..., p + k] (lane roll).  Wrapped lanes are never consumed
    at valid in-sample offsets (all consumed shifts stay inside a 16-lane block,
    and the compaction cascade's receiving lanes are exact zeros)."""
    return pltpu.roll(x, LANES - k, axis=1)


def simple_cnn_kernel(x_ref, cw_ref, fw_ref, fb_ref, o_ref):
    """x_ref : VMEM (TB, 128) f32 -- 8 samples per row, 16 lanes each
       cw_ref: SMEM (4,)  f32     -- conv kernel [w00, w01, w10, w11]
       fw_ref: SMEM (8,)  f32     -- fc weight, row-major (2, 4)
       fb_ref: SMEM (2,)  f32     -- fc bias
       o_ref : VMEM (TB, 16) f32  -- compacted logits: sample k of a row at
                                     lanes 2k (out0) and 2k+1 (out1)
    """
    x = x_ref[...]                                              # (TB, 128)

    # ---- Conv2d(k=2, stride=1, no bias), shift-factored (2 rolls) ----------
    # conv[p] = x[p]*w00 + x[p+1]*w01 + x[p+4]*w10 + x[p+5]*w11
    # valid at in-sample offsets p = 4i+j, i,j in {0,1,2}.
    s1 = _shift_left(x, 1)
    row_a = x * cw_ref[0] + s1 * cw_ref[1]
    row_b = x * cw_ref[2] + s1 * cw_ref[3]
    conv = row_a + _shift_left(row_b, 4)

    # ---- ReLU + MaxPool2d(k=2, stride=1), shift-factored (2 rolls) ---------
    # pool[p] = max(0, conv[p], conv[p+1], conv[p+4], conv[p+5]);
    # (max(relu(a),relu(b)) == max(max(a,b),0)), valid at offsets {0,1,4,5}.
    m01 = jnp.maximum(conv, _shift_left(conv, 1))
    pool = jnp.maximum(jnp.maximum(m01, _shift_left(m01, 4)), 0.0)

    # ---- Linear(4 -> 2) as scalar VPU multiplies/adds ----------------------
    # Flattened pooled features of a sample sit at offsets {0, 1, 4, 5}.
    f1 = _shift_left(pool, 1)
    f2 = _shift_left(pool, 4)
    f3 = _shift_left(pool, 5)
    out0 = (pool * fw_ref[0] + f1 * fw_ref[1] + f2 * fw_ref[2] + f3 * fw_ref[3]
            + fb_ref[0])                                        # valid at offset 0
    out1 = (pool * fw_ref[4] + f1 * fw_ref[5] + f2 * fw_ref[6] + f3 * fw_ref[7]
            + fb_ref[1])                                        # valid at offset 0

    # ---- Pair packing: out0 -> offset 0, out1 -> offset 1, zero elsewhere --
    off = jax.lax.broadcasted_iota(jnp.int32, x.shape, 1) & (SAMPLE_LANES - 1)
    pair = jnp.where(off == 1, pltpu.roll(out1, 1, axis=1),
                     jnp.where(off == 0, out0, 0.0))

    # ---- Output compaction: pairs at 16-lane pitch -> lanes 0..15 ----------
    # Pure shift-add cascade (3 rolls + 3 adds).  Because `pair` is exactly
    # zero outside offsets {0,1}, every add lands on zeros and is exact; the
    # wrapped lanes of each roll only ever land at offsets >= 16 of the row
    # and are never read.  After the cascade, lanes 2k / 2k+1 of every row
    # hold the logits of the row's k-th sample.
    z = pair + _shift_left(pair, 14)    # pairs -> offsets {0..3}  (32-pitch)
    z = z + _shift_left(z, 28)          # quads -> offsets {0..7}  (64-pitch)
    z = z + _shift_left(z, 56)          # octs  -> offsets {0..15}

    # Store only the 16 useful lanes per row (8x less output HBM traffic).
    o_ref[...] = z[:, :SAMPLE_LANES]


def simple_cnn_forward(x_nchw, conv_w, fc_w, fc_b, *,
                       block_rows=2048, target_steps=8):
    """x_nchw: (B, 1, 4, 4) f32 -> (B, 2) f32, matching SimpleCNN.forward."""
    B = x_nchw.shape[0]
    x2d = x_nchw.reshape(B, SAMPLE_LANES).astype(jnp.float32)   # (B, 16)

    # Lane-dense packing: 8 samples per 128-lane row.  Pad rows only to the
    # sublane multiple (8), then size the block for ~target_steps grid steps
    # (>= 2 so both v7x TensorCores engage, >= 4 for DMA/compute overlap),
    # capped at block_rows.  Padding waste is at most one block.
    rows = pl.cdiv(B, SAMPLES_PER_ROW)
    rows8 = _round_up(rows, 8)
    tb = _round_up(max(8, min(block_rows,
                              _round_up(pl.cdiv(rows8, target_steps), 8))), 8)
    rows_pad = _round_up(rows8, tb)
    b_pad = rows_pad * SAMPLES_PER_ROW
    if b_pad != B:
        x2d = jnp.pad(x2d, ((0, b_pad - B), (0, 0)))
    x_packed = x2d.reshape(rows_pad, LANES)                      # contiguous

    cw = conv_w.reshape(4).astype(jnp.float32)                   # [w00,w01,w10,w11]
    fw = fc_w.reshape(8).astype(jnp.float32)                     # row-major (2,4)
    fb = fc_b.reshape(2).astype(jnp.float32)

    out_packed = pl.pallas_call(
        simple_cnn_kernel,
        out_shape=jax.ShapeDtypeStruct((rows_pad, SAMPLE_LANES), jnp.float32),
        grid=(rows_pad // tb,),
        in_specs=[
            pl.BlockSpec((tb, LANES), lambda i: (i, 0)),              # x tiles
            pl.BlockSpec(memory_space=pltpu.MemorySpace.SMEM),        # conv w
            pl.BlockSpec(memory_space=pltpu.MemorySpace.SMEM),        # fc w
            pl.BlockSpec(memory_space=pltpu.MemorySpace.SMEM),        # fc b
        ],
        out_specs=pl.BlockSpec((tb, SAMPLE_LANES), lambda i: (i, 0)),
        compiler_params=pltpu.CompilerParams(
            dimension_semantics=("parallel",)),
    )(x_packed, cw, fw, fb)

    # Free unpack: row r holds samples 8r..8r+7; sample k's logits sit at
    # lanes 2k, 2k+1, so a plain reshape recovers (b_pad, 2).
    return out_packed.reshape(b_pad, 2)[:B]


def reference_forward(x_nchw, conv_w, fc_w, fc_b):
    """Pure-JAX reference reproducing PyTorch semantics (for verification)."""
    B = x_nchw.shape[0]
    xi = x_nchw[:, 0]                                            # (B, 4, 4)
    w = conv_w[0, 0]                                             # (2, 2)
    conv = (xi[:, :3, :3] * w[0, 0] + xi[:, :3, 1:] * w[0, 1]
            + xi[:, 1:, :3] * w[1, 0] + xi[:, 1:, 1:] * w[1, 1])  # (B,3,3)
    relu = jnp.maximum(conv, 0.0)
    pool = jnp.maximum(jnp.maximum(relu[:, :2, :2], relu[:, :2, 1:]),
                       jnp.maximum(relu[:, 1:, :2], relu[:, 1:, 1:]))  # (B,2,2)
    flat = pool.reshape(B, 4)
    return flat @ fc_w.T + fc_b


if __name__ == "__main__":
    # Deterministic parameters, exactly as in SimpleCNN.__init__ .
    conv_w = jnp.array([[[[1.0, 0.5], [0.5, 1.0]]]], dtype=jnp.float32)  # (1,1,2,2)
    fc_w = jnp.array([[0.1, 0.2, 0.3, 0.4],
                      [0.4, 0.3, 0.2, 0.1]], dtype=jnp.float32)          # (2,4)
    fc_b = jnp.array([0.1, -0.1], dtype=jnp.float32)                     # (2,)

    key = jax.random.PRNGKey(0)

    # Small canonical test: batch=2, NCHW = (2, 1, 4, 4).
    x = jax.random.normal(key, (2, 1, 4, 4), dtype=jnp.float32)
    out = jax.block_until_ready(simple_cnn_forward(x, conv_w, fc_w, fc_b))
    ref = reference_forward(x, conv_w, fc_w, fc_b)
    assert out.shape == (2, 2)
    assert jnp.allclose(out, ref, atol=1e-5, rtol=1e-5), (out, ref)

    # Non-multiple-of-8 batch: exercises row padding + a 5-step grid (tb=8).
    x2 = jax.random.normal(jax.random.PRNGKey(1), (300, 1, 4, 4), dtype=jnp.float32)
    out2 = jax.block_until_ready(simple_cnn_forward(x2, conv_w, fc_w, fc_b))
    ref2 = reference_forward(x2, conv_w, fc_w, fc_b)
    assert out2.shape == (300, 2)
    assert jnp.allclose(out2, ref2, atol=1e-5, rtol=1e-5)

    # Larger batch: multi-vreg blocks (tb=16) and an 8-step pipelined grid.
    x3 = jax.random.normal(jax.random.PRNGKey(2), (1000, 1, 4, 4), dtype=jnp.float32)
    out3 = jax.block_until_ready(simple_cnn_forward(x3, conv_w, fc_w, fc_b))
    ref3 = reference_forward(x3, conv_w, fc_w, fc_b)
    assert out3.shape == (1000, 2)
    assert jnp.allclose(out3, ref3, atol=1e-5, rtol=1e-5)

    print("KERNEL_OK")
</pallas_src>

<mosaic_0001>
module attributes {stable_mosaic.version = 11 : i64} {
  func.func @simple_cnn_kernel(%arg0: i32, %arg1: memref<8x128xf32, #tpu.memory_space<vmem>>, %arg2: memref<4xf32, #tpu.memory_space<smem>>, %arg3: memref<8xf32, #tpu.memory_space<smem>>, %arg4: memref<2xf32, #tpu.memory_space<smem>>, %arg5: memref<8x16xf32, #tpu.memory_space<vmem>>) attributes {dimension_semantics = [#tpu.dimension_semantics<parallel>], iteration_bounds = array<i64: 1>, scalar_prefetch = 0 : i64, scratch_operands = 0 : i64, tpu.core_type = #tpu.core_type<tc>, window_params = [{transform_indices = @transform_0, window_bounds = array<i64: 8, 128>}, {transform_indices = @transform_1, window_bounds = array<i64: 4>}, {transform_indices = @transform_2, window_bounds = array<i64: 8>}, {transform_indices = @transform_3, window_bounds = array<i64: 2>}, {transform_indices = @transform_4, window_bounds = array<i64: 8, 16>}]} {
    %c0 = arith.constant 0 : index
    %c0_0 = arith.constant 0 : index
    %0 = vector.load %arg1[%c0, %c0_0] : memref<8x128xf32, #tpu.memory_space<vmem>>, vector<8x128xf32>
    %c127_i32 = arith.constant 127 : i32
    %1 = tpu.dynamic_rotate %0 by %c127_i32 dim 1 : vector<8x128xf32>, i32 -> vector<8x128xf32>
    %c0_1 = arith.constant 0 : index
    %2 = memref.load %arg2[%c0_1] : memref<4xf32, #tpu.memory_space<smem>>
    %3 = vector.broadcast %2 : f32 to vector<8x128xf32>
    %4 = arith.mulf %0, %3 : vector<8x128xf32>
    %c1 = arith.constant 1 : index
    %5 = memref.load %arg2[%c1] : memref<4xf32, #tpu.memory_space<smem>>
    %6 = vector.broadcast %5 : f32 to vector<8x128xf32>
    %7 = arith.mulf %1, %6 : vector<8x128xf32>
    %8 = arith.addf %4, %7 : vector<8x128xf32>
    %c2 = arith.constant 2 : index
    %9 = memref.load %arg2[%c2] : memref<4xf32, #tpu.memory_space<smem>>
    %10 = vector.broadcast %9 : f32 to vector<8x128xf32>
    %11 = arith.mulf %0, %10 : vector<8x128xf32>
    %c3 = arith.constant 3 : index
    %12 = memref.load %arg2[%c3] : memref<4xf32, #tpu.memory_space<smem>>
    %13 = vector.broadcast %12 : f32 to vector<8x128xf32>
    %14 = arith.mulf %1, %13 : vector<8x128xf32>
    %15 = arith.addf %11, %14 : vector<8x128xf32>
    %c124_i32 = arith.constant 124 : i32
    %16 = tpu.dynamic_rotate %15 by %c124_i32 dim 1 : vector<8x128xf32>, i32 -> vector<8x128xf32>
    %17 = arith.addf %8, %16 : vector<8x128xf32>
    %c127_i32_2 = arith.constant 127 : i32
    %18 = tpu.dynamic_rotate %17 by %c127_i32_2 dim 1 : vector<8x128xf32>, i32 -> vector<8x128xf32>
    %19 = arith.maximumf %17, %18 : vector<8x128xf32>
    %c124_i32_3 = arith.constant 124 : i32
    %20 = tpu.dynamic_rotate %19 by %c124_i32_3 dim 1 : vector<8x128xf32>, i32 -> vector<8x128xf32>
    %21 = arith.maximumf %19, %20 : vector<8x128xf32>
    %cst = arith.constant 0.000000e+00 : f32
    %22 = vector.broadcast %cst : f32 to vector<8x128xf32>
    %23 = arith.maximumf %21, %22 : vector<8x128xf32>
    %c127_i32_4 = arith.constant 127 : i32
    %24 = tpu.dynamic_rotate %23 by %c127_i32_4 dim 1 : vector<8x128xf32>, i32 -> vector<8x128xf32>
    %c124_i32_5 = arith.constant 124 : i32
    %25 = tpu.dynamic_rotate %23 by %c124_i32_5 dim 1 : vector<8x128xf32>, i32 -> vector<8x128xf32>
    %c123_i32 = arith.constant 123 : i32
    %26 = tpu.dynamic_rotate %23 by %c123_i32 dim 1 : vector<8x128xf32>, i32 -> vector<8x128xf32>
    %c0_6 = arith.constant 0 : index
    %27 = memref.load %arg3[%c0_6] : memref<8xf32, #tpu.memory_space<smem>>
    %28 = vector.broadcast %27 : f32 to vector<8x128xf32>
    %29 = arith.mulf %23, %28 : vector<8x128xf32>
    %c1_7 = arith.constant 1 : index
    %30 = memref.load %arg3[%c1_7] : memref<8xf32, #tpu.memory_space<smem>>
    %31 = vector.broadcast %30 : f32 to vector<8x128xf32>
    %32 = arith.mulf %24, %31 : vector<8x128xf32>
    %33 = arith.addf %29, %32 : vector<8x128xf32>
    %c2_8 = arith.constant 2 : index
    %34 = memref.load %arg3[%c2_8] : memref<8xf32, #tpu.memory_space<smem>>
    %35 = vector.broadcast %34 : f32 to vector<8x128xf32>
    %36 = arith.mulf %25, %35 : vector<8x128xf32>
    %37 = arith.addf %33, %36 : vector<8x128xf32>
    %c3_9 = arith.constant 3 : index
    %38 = memref.load %arg3[%c3_9] : memref<8xf32, #tpu.memory_space<smem>>
    %39 = vector.broadcast %38 : f32 to vector<8x128xf32>
    %40 = arith.mulf %26, %39 : vector<8x128xf32>
    %41 = arith.addf %37, %40 : vector<8x128xf32>
    %c0_10 = arith.constant 0 : index
    %42 = memref.load %arg4[%c0_10] : memref<2xf32, #tpu.memory_space<smem>>
    %43 = vector.broadcast %42 : f32 to vector<8x128xf32>
    %44 = arith.addf %41, %43 : vector<8x128xf32>
    %c4 = arith.constant 4 : index
    %45 = memref.load %arg3[%c4] : memref<8xf32, #tpu.memory_space<smem>>
    %46 = vector.broadcast %45 : f32 to vector<8x128xf32>
    %47 = arith.mulf %23, %46 : vector<8x128xf32>
    %c5 = arith.constant 5 : index
    %48 = memref.load %arg3[%c5] : memref<8xf32, #tpu.memory_space<smem>>
    %49 = vector.broadcast %48 : f32 to vector<8x128xf32>
    %50 = arith.mulf %24, %49 : vector<8x128xf32>
    %51 = arith.addf %47, %50 : vector<8x128xf32>
    %c6 = arith.constant 6 : index
    %52 = memref.load %arg3[%c6] : memref<8xf32, #tpu.memory_space<smem>>
    %53 = vector.broadcast %52 : f32 to vector<8x128xf32>
    %54 = arith.mulf %25, %53 : vector<8x128xf32>
    %55 = arith.addf %51, %54 : vector<8x128xf32>
    %c7 = arith.constant 7 : index
    %56 = memref.load %arg3[%c7] : memref<8xf32, #tpu.memory_space<smem>>
    %57 = vector.broadcast %56 : f32 to vector<8x128xf32>
    %58 = arith.mulf %26, %57 : vector<8x128xf32>
    %59 = arith.addf %55, %58 : vector<8x128xf32>
    %c1_11 = arith.constant 1 : index
    %60 = memref.load %arg4[%c1_11] : memref<2xf32, #tpu.memory_space<smem>>
    %61 = vector.broadcast %60 : f32 to vector<8x128xf32>
    %62 = arith.addf %59, %61 : vector<8x128xf32>
    %63 = tpu.iota {dimensions = array<i32: 1>} : vector<8x128xi32>
    %c15_i32 = arith.constant 15 : i32
    %64 = vector.broadcast %c15_i32 : i32 to vector<8x128xi32>
    %65 = arith.andi %63, %64 : vector<8x128xi32>
    %c1_i32 = arith.constant 1 : i32
    %66 = vector.broadcast %c1_i32 : i32 to vector<8x128xi32>
    %67 = arith.cmpi eq, %65, %66 : vector<8x128xi32>
    %c1_i32_12 = arith.constant 1 : i32
    %68 = tpu.dynamic_rotate %62 by %c1_i32_12 dim 1 : vector<8x128xf32>, i32 -> vector<8x128xf32>
    %c0_i32 = arith.constant 0 : i32
    %69 = vector.broadcast %c0_i32 : i32 to vector<8x128xi32>
    %70 = arith.cmpi eq, %65, %69 : vector<8x128xi32>
    %cst_13 = arith.constant 0.000000e+00 : f32
    %71 = vector.broadcast %cst_13 : f32 to vector<8x128xf32>
    %72 = arith.select %70, %44, %71 : vector<8x128xi1>, vector<8x128xf32>
    %73 = arith.select %67, %68, %72 : vector<8x128xi1>, vector<8x128xf32>
    %c114_i32 = arith.constant 114 : i32
    %74 = tpu.dynamic_rotate %73 by %c114_i32 dim 1 : vector<8x128xf32>, i32 -> vector<8x128xf32>
    %75 = arith.addf %73, %74 : vector<8x128xf32>
    %c100_i32 = arith.constant 100 : i32
    %76 = tpu.dynamic_rotate %75 by %c100_i32 dim 1 : vector<8x128xf32>, i32 -> vector<8x128xf32>
    %77 = arith.addf %75, %76 : vector<8x128xf32>
    %c72_i32 = arith.constant 72 : i32
    %78 = tpu.dynamic_rotate %77 by %c72_i32 dim 1 : vector<8x128xf32>, i32 -> vector<8x128xf32>
    %79 = arith.addf %77, %78 : vector<8x128xf32>
    %80 = vector.extract_strided_slice %79 {offsets = [0, 0], sizes = [8, 16], strides = [1, 1]} : vector<8x128xf32> to vector<8x16xf32>
    %c0_14 = arith.constant 0 : index
    %c0_15 = arith.constant 0 : index
    %81 = vector.load %arg5[%c0_14, %c0_15] : memref<8x16xf32, #tpu.memory_space<vmem>>, vector<8x16xf32>
    tpu.vector_store %arg5[%c0_14, %c0_15], %80 {strides = array<i32>} : memref<8x16xf32, #tpu.memory_space<vmem>>, vector<8x16xf32>,
    return
  }
  func.func @transform_0(%arg0: i32) -> (i32, i32) {
    %c0_i32 = arith.constant 0 : i32
    %c0_i32_0 = arith.constant 0 : i32
    return %arg0, %c0_i32 : i32, i32
  }
  func.func @transform_1(%arg0: i32) -> i32 {
    %c0_i32 = arith.constant 0 : i32
    %c0_i32_0 = arith.constant 0 : i32
    return %c0_i32 : i32
  }
  func.func @transform_2(%arg0: i32) -> i32 {
    %c0_i32 = arith.constant 0 : i32
    %c0_i32_0 = arith.constant 0 : i32
    return %c0_i32 : i32
  }
  func.func @transform_3(%arg0: i32) -> i32 {
    %c0_i32 = arith.constant 0 : i32
    %c0_i32_0 = arith.constant 0 : i32
    return %c0_i32 : i32
  }
  func.func @transform_4(%arg0: i32) -> (i32, i32) {
    %c0_i32 = arith.constant 0 : i32
    %c0_i32_0 = arith.constant 0 : i32
    return %arg0, %c0_i32 : i32, i32
  }
}

</mosaic_0001>

<llo_original>
// kernel: tpu_custom_call.1
$region0: #{tpu_custom_call.1}
  #allocation0 [shape = 'u32[]', space=smem, size = 0x4, offset = 0x4, fixed_abs, tag = 'smem constant byte address 0x4 - core index']
  #allocation1 [shape = 'u32[144,128]{1,0:T(1,128)}', space=vmem, size = 0x12000, scoped, tag = 'internal scratch']
  %s0 = inlined_call_operand.hbm [shape: f32[8,128], index: 0, kind: input, shape index: {}]
  %s1 = inlined_call_operand.vmem [shape: f32[4], index: 1, kind: input, shape index: {}]
  %s2 = inlined_call_operand.vmem [shape: f32[8], index: 2, kind: input, shape index: {}]
  %s3 = inlined_call_operand.vmem [shape: f32[2], index: 3, kind: input, shape index: {}]
  %s4 = inlined_call_operand.hbm [shape: f32[8,16], index: 4, kind: output, shape index: {}]
  %s5 = sld [smem:[#allocation0]]
  $region42: #{tpu_custom_call.1} parent=0
    _
  %s7 = ssub.s32 1, %s5
  %s8 = scalar_select 0, %s7, %s5
  $region1: #{tpu_custom_call.1} parent=0
    #allocation2 [shape = 'u8[4096]{0}', space=vmem, size = 0x1000, scoped, tag = 'input window, operand 0, single buffered']
    #allocation3 [shape = 's32[1]{0}', space=sflag, size = 0x4, scoped, tag = 'scoped memory for tpu_custom_call.1']
    #allocation4 [shape = 's32[1]{0}', space=sflag, size = 0x4, scoped, tag = 'scoped memory for tpu_custom_call.1']
    #allocation5 [shape = 's32[1]{0}', space=sflag, size = 0x4, scoped, tag = 'scoped memory for tpu_custom_call.1']
    #allocation6 [shape = 'u8[512]{0}', space=smem, size = 0x200, scoped, tag = 'input window, operand 1, single buffered']
    #allocation7 [shape = 'u8[512]{0}', space=smem, size = 0x200, scoped, tag = 'input window, operand 2, single buffered']
    #allocation8 [shape = 's32[1]{0}', space=sflag, size = 0x4, scoped, tag = 'scoped memory for tpu_custom_call.1']
    #allocation9 [shape = 'u8[512]{0}', space=smem, size = 0x200, scoped, tag = 'input window, operand 3, single buffered']
    #allocation10 [shape = 'u8[4096]{0}', space=vmem, size = 0x1000, scoped, tag = 'output window, operand 0, single buffered']
    %9 = vsyncpa [#allocation3], 0
    %10 = vsyncpa [#allocation5], 0
    %11 = vsyncpa [#allocation8], 0
    %12 = vsyncpa [#allocation4], 0
    // Predicated region
    $region2: #{tpu_custom_call.1} parent=1 // pred_check
      _
    $region3: #{tpu_custom_call.1} parent=1 // pred_check_branch
      %14 = sbr.rel (0) target = $region5
    $region4: #{tpu_custom_call.1} parent=1 // pred_region
      %s16 = ssub.s32 128, 128
      %17 = vsyncadd [#allocation3], %s16
      %s19 = sshll.u32 [#allocation2], 4
      %s20 = int_to_ptr.vmem [resolvable:$true] %s19
      %22 = dma.hbm_to_vmem [thread:$0]  %s0, 128, %s20, [#allocation3]
    $region5: #{tpu_custom_call.1} parent=1 // pred_fallthru
      _
    // Predicated region
    $region6: #{tpu_custom_call.1} parent=1 // pred_check
      _
    $region7: #{tpu_custom_call.1} parent=1 // pred_check_branch
      %24 = sbr.rel (0) target = $region9
    $region8: #{tpu_custom_call.1} parent=1 // pred_region
      %s26 = ssub.s32 16, 16
      %27 = vsyncadd [#allocation5], %s26
      %s29 = sshll.u32 %s1, 4
      %s30 = int_to_ptr.vmem [resolvable:$true] %s29
      %32 = dma.vmem_to_smem %s30, 16, [#allocation6], [#allocation5]
    $region9: #{tpu_custom_call.1} parent=1 // pred_fallthru
      _
    // Predicated region
    $region10: #{tpu_custom_call.1} parent=1 // pred_check
      _
    $region11: #{tpu_custom_call.1} parent=1 // pred_check_branch
      %34 = sbr.rel (0) target = $region13
    $region12: #{tpu_custom_call.1} parent=1 // pred_region
      %s36 = ssub.s32 16, 16
      %37 = vsyncadd [#allocation8], %s36
      %s39 = sshll.u32 %s2, 4
      %s40 = int_to_ptr.vmem [resolvable:$true] %s39
      %42 = dma.vmem_to_smem %s40, 16, [#allocation7], [#allocation8]
    $region13: #{tpu_custom_call.1} parent=1 // pred_fallthru
      _
    // Predicated region
    $region14: #{tpu_custom_call.1} parent=1 // pred_check
      _
    $region15: #{tpu_custom_call.1} parent=1 // pred_check_branch
      %44 = sbr.rel (0) target = $region17
    $region16: #{tpu_custom_call.1} parent=1 // pred_region
      %s46 = ssub.s32 16, 16
      %47 = vsyncadd [#allocation8], %s46
      %s49 = sshll.u32 %s3, 4
      %s50 = int_to_ptr.vmem [resolvable:$true] %s49
      %52 = dma.vmem_to_smem %s50, 16, [#allocation9], [#allocation8]
    $region17: #{tpu_custom_call.1} parent=1 // pred_fallthru
      _
    // Predicated region
    $region18: #{tpu_custom_call.1} parent=1 // pred_check
      _
    $region19: #{tpu_custom_call.1} parent=1 // pred_check_branch
      %54 = sbr.rel (0) target = $region21
    $region20: #{tpu_custom_call.1} parent=1 // pred_region
      %55 = dma.done [#allocation3], 128
    $region21: #{tpu_custom_call.1} parent=1 // pred_fallthru
      _
    // Predicated region
    $region22: #{tpu_custom_call.1} parent=1 // pred_check
      _
    $region23: #{tpu_custom_call.1} parent=1 // pred_check_branch
      %57 = sbr.rel (0) target = $region25
    $region24: #{tpu_custom_call.1} parent=1 // pred_region
      %58 = dma.done [#allocation5], 16
    $region25: #{tpu_custom_call.1} parent=1 // pred_fallthru
      _
    // Predicated region
    $region26: #{tpu_custom_call.1} parent=1 // pred_check
      _
    $region27: #{tpu_custom_call.1} parent=1 // pred_check_branch
      %60 = sbr.rel (0) target = $region29
    $region28: #{tpu_custom_call.1} parent=1 // pred_region
      %61 = dma.done [#allocation8], 16
    $region29: #{tpu_custom_call.1} parent=1 // pred_fallthru
      _
    // Predicated region
    $region30: #{tpu_custom_call.1} parent=1 // pred_check
      _
    $region31: #{tpu_custom_call.1} parent=1 // pred_check_branch
      %63 = sbr.rel (0) target = $region33
    $region32: #{tpu_custom_call.1} parent=1 // pred_region
      %64 = dma.done [#allocation8], 16
    $region33: #{tpu_custom_call.1} parent=1 // pred_fallthru
      _
    %65 = sfence
    %v66 = vld [vmem:[#allocation2] sm:$0xff]
    %67 = vrot.lane.b32.xlu0 %v66, 127
    %v68 = vpop.permute.xlu0 %67
    %s69 = sld [smem:[#allocation6]]
    %v70 = vstv %s69
    %v71 = vmul.f32 %v66, %v70
    %s72 = sld [smem:[#allocation6 + $0x1]]
    %v73 = vstv %s72
    %v74 = vmul.f32 %v68, %v73
    %v75 = vadd.f32 %v71, %v74
    %s76 = sld [smem:[#allocation6 + $0x2]]
    %v77 = vstv %s76
    %v78 = vmul.f32 %v66, %v77
    %s79 = sld [smem:[#allocation6 + $0x3]]
    %v80 = vstv %s79
    %v81 = vmul.f32 %v68, %v80
    %v82 = vadd.f32 %v78, %v81
    %83 = vrot.lane.b32.xlu0 %v82, 124
    %v84 = vpop.permute.xlu0 %83
    %v85 = vadd.f32 %v75, %v84
    %86 = vrot.lane.b32.xlu0 %v85, 127
    %v87 = vpop.permute.xlu0 %86
    %v88 = vmax.f32 %v85, %v87
    %89 = vrot.lane.b32.xlu0 %v88, 124
    %v90 = vpop.permute.xlu0 %89
    %v91 = vmax.f32 %v88, %v90
    %v92 = vmax.f32 %v91, 0.0
    %93 = vrot.lane.b32.xlu0 %v92, 127
    %v94 = vpop.permute.xlu0 %93
    %95 = vrot.lane.b32.xlu0 %v92, 124
    %v96 = vpop.permute.xlu0 %95
    %97 = vrot.lane.b32.xlu0 %v92, 123
    %v98 = vpop.permute.xlu0 %97
    %s99 = sld [smem:[#allocation7]]
    %v100 = vstv %s99
    %v101 = vmul.f32 %v92, %v100
    %s102 = sld [smem:[#allocation7 + $0x1]]
    %v103 = vstv %s102
    %v104 = vmul.f32 %v94, %v103
    %v105 = vadd.f32 %v101, %v104
    %s106 = sld [smem:[#allocation7 + $0x2]]
    %v107 = vstv %s106
    %v108 = vmul.f32 %v96, %v107
    %v109 = vadd.f32 %v105, %v108
    %s110 = sld [smem:[#allocation7 + $0x3]]
    %v111 = vstv %s110
    %v112 = vmul.f32 %v98, %v111
    %v113 = vadd.f32 %v109, %v112
    %s114 = sld [smem:[#allocation9]]
    %v115 = vstv %s114
    %v116 = vadd.f32 %v113, %v115
    %s117 = sld [smem:[#allocation7 + $0x4]]
    %v118 = vstv %s117
    %v119 = vmul.f32 %v92, %v118
    %s120 = sld [smem:[#allocation7 + $0x5]]
    %v121 = vstv %s120
    %v122 = vmul.f32 %v94, %v121
    %v123 = vadd.f32 %v119, %v122
    %s124 = sld [smem:[#allocation7 + $0x6]]
    %v125 = vstv %s124
    %v126 = vmul.f32 %v96, %v125
    %v127 = vadd.f32 %v123, %v126
    %s128 = sld [smem:[#allocation7 + $0x7]]
    %v129 = vstv %s128
    %v130 = vmul.f32 %v98, %v129
    %v131 = vadd.f32 %v127, %v130
    %s132 = sld [smem:[#allocation9 + $0x1]]
    %v133 = vstv %s132
    %v134 = vadd.f32 %v131, %v133
    %v135 = vlaneseq
    %v136 = vand.u32 %v135, 127
    %v137 = vand.u32 %v136, 15
    %vm138 = vcmp.eq.s32.totalorder %v137, 1
    %139 = vrot.lane.b32.xlu0 %v134, 1
    %v140 = vpop.permute.xlu0 %139
    %vm141 = vcmp.eq.s32.totalorder %v137, 0
    %v142 = vsel %vm141, %v116, 0.0
    %v143 = vsel %vm138, %v140, %v142
    %144 = vrot.lane.b32.xlu0 %v143, 114
    %v145 = vpop.permute.xlu0 %144
    %v146 = vadd.f32 %v143, %v145
    %147 = vrot.lane.b32.xlu0 %v146, 100
    %v148 = vpop.permute.xlu0 %147
    %v149 = vadd.f32 %v146, %v148
    %150 = vrot.lane.b32.xlu0 %v149, 72
    %v151 = vpop.permute.xlu0 %150
    %v152 = vadd.f32 %v149, %v151
    %vm153 = vcmask 130048
    %154 = vst.msk [vmem:[#allocation10] sm:$0xff] %vm153, %v152
    // Predicated region
    $region34: #{tpu_custom_call.1} parent=1 // pred_check
      _
    $region35: #{tpu_custom_call.1} parent=1 // pred_check_branch
      %156 = sbr.rel (0) target = $region37
    $region36: #{tpu_custom_call.1} parent=1 // pred_region
      %s158 = ssub.s32 128, 128
      %159 = vsyncadd [#allocation4], %s158
      %s161 = sshll.u32 [#allocation10], 4
      %s162 = int_to_ptr.vmem [resolvable:$true] %s161
      %164 = dma.vmem_to_hbm [thread:$0]  %s162, 128, %s4, [#allocation4]
    $region37: #{tpu_custom_call.1} parent=1 // pred_fallthru
      _
    // Predicated region
    $region38: #{tpu_custom_call.1} parent=1 // pred_check
      _
    $region39: #{tpu_custom_call.1} parent=1 // pred_check_branch
      %166 = sbr.rel (0) target = $region41
    $region40: #{tpu_custom_call.1} parent=1 // pred_region
      %167 = dma.done [#allocation4], 128
    $region41: #{tpu_custom_call.1} parent=1 // pred_fallthru
      _
    %168 = vsyncpa [#allocation3], 1
    %169 = vsyncpa [#allocation4], 1
    %170 = vsyncpa [#allocation5], 1
    %171 = vsyncpa [#allocation8], 1

</llo_original>
